<compile_context>
chip_gen: v5e
topology: v5e:2x2
jax: 0.10.0
libtpu: 0.0.40
codegen_flags: <defaults>
</compile_context>

<pallas_src>
import functools

import jax
import jax.numpy as jnp
from jax.experimental import pallas as pl
from jax.experimental.pallas import tpu as pltpu


def _round_up(a, b):
    return (a + b - 1) // b * b


def _bce_dice_kernel(x_ref, y_ref, out_ref, bce_acc, tp_acc, sum_acc, *,
                     tile_l, l_actual, needs_col_mask):
    j = pl.program_id(1)
    nj = pl.num_programs(1)

    # --- init per-row accumulators on the first spatial tile ---
    @pl.when(j == 0)
    def _():
        bce_acc[...] = jnp.zeros_like(bce_acc)
        tp_acc[...] = jnp.zeros_like(tp_acc)
        sum_acc[...] = jnp.zeros_like(sum_acc)

    def accumulate(masked):
        x = x_ref[...].astype(jnp.float32)   # logits
        y = y_ref[...].astype(jnp.float32)   # targets in [0, 1]

        if masked:
            # Mask the inputs BEFORE any transcendental: out-of-bounds lanes
            # hold unspecified data (possibly Inf/NaN) since nothing was
            # pre-padded, and 0 * Inf would poison the row sums otherwise.
            lane = jax.lax.broadcasted_iota(jnp.int32, x.shape, 1)
            inb = (j * tile_l + lane) < l_actual
            x = jnp.where(inb, x, 0.0)
            y = jnp.where(inb, y, 0.0)

        # Single transcendental per element, shared by BCE softplus & sigmoid.
        e = jnp.exp(-jnp.abs(x))
        bce_elem = jnp.maximum(x, 0.0) - x * y + jnp.log1p(e)
        p = 1.0 / (1.0 + e)
        s = jnp.where(x >= 0, p, 1.0 - p)    # sigmoid(x), no second exp

        if masked:
            # x==0 at masked lanes gives bce_elem=log(2), s=0.5 -> zero them.
            # (finite-safe: inputs were already masked, so no 0*Inf here)
            mf = inb.astype(jnp.float32)
            bce_elem = bce_elem * mf
            s = s * mf

        # --- accumulate per-row partials (lane reductions) ---
        bce_acc[...] += jnp.sum(bce_elem, axis=-1, keepdims=True)
        tp_acc[...] += jnp.sum(s * y, axis=-1, keepdims=True)
        sum_acc[...] += jnp.sum(s + y, axis=-1, keepdims=True)  # sum(s)+sum(y)

    if needs_col_mask:
        # Only the last spatial tile is ragged; everything else takes the
        # unmasked fast path (no iota/compare/select per element).
        @pl.when(j != nj - 1)
        def _():
            accumulate(masked=False)

        @pl.when(j == nj - 1)
        def _():
            accumulate(masked=True)
    else:
        accumulate(masked=False)

    # --- emit lane-dense stats block on the last spatial tile ---
    @pl.when(j == nj - 1)
    def _():
        lane = jax.lax.broadcasted_iota(jnp.int32, out_ref.shape, 1)
        out_ref[...] = jnp.where(
            lane == 0, bce_acc[...],
            jnp.where(lane == 1, tp_acc[...],
                      jnp.where(lane == 2, sum_acc[...], 0.0)))


def bce_dice_loss(y_pred, y_true, *, bce_ratio=0.5, dice_ratio=0.5, smooth=1.0):
    """y_pred, y_true: NCHW arrays (logits / targets). Returns scalar f32 loss.

    Inputs are streamed in their native dtype (f32 / bf16 / integer masks all
    work); all in-register math is done in f32.
    """
    N, C, H, W = y_pred.shape
    R, L = N * C, H * W
    xp = y_pred.reshape(R, L)
    yt = y_true.reshape(R, L)

    # ----- tile plan (no padding of the inputs; cdiv grid + ragged tiles) ----
    # Lane-dense spatial tiles; multiple of 128 (or the 128-rounded full L).
    tile_l = min(4096, _round_up(L, 128))

    # Bytes streamed per element across both inputs (native dtypes).
    elem_bytes = xp.dtype.itemsize + yt.dtype.itemsize

    # Conservative input double-buffer budget, safe on v5e/v6e (128 MiB VMEM)
    # and v7x (64 MiB per TensorCore, 32 MiB default scoped).
    in_budget = 20 * 1024 * 1024

    r_aligned = _round_up(R, 8)
    tile_r = 8
    for cand in (512, 256, 128, 64, 32, 16, 8):
        if cand > r_aligned:
            continue
        if 2 * cand * tile_l * elem_bytes > in_budget:
            continue
        # Keep >= 2 row blocks when enough rows exist so the "parallel" axis
        # splits across both v7x TensorCores (no-op on v5e/v6e single-TC).
        if r_aligned >= 16 and pl.cdiv(R, cand) < 2:
            continue
        tile_r = cand
        break

    grid_rows = pl.cdiv(R, tile_r)
    grid_cols = pl.cdiv(L, tile_l)
    grid = (grid_rows, grid_cols)
    needs_col_mask = (L % tile_l) != 0

    # Explicit scoped-VMEM request sized to the plan (v5e default is 16 MiB).
    in_bytes = 2 * tile_r * tile_l * elem_bytes            # double-buffered inputs
    out_bytes = 2 * tile_r * 128 * 4                       # double-buffered output
    scratch_bytes = 3 * tile_r * 128 * 4                   # (tile_r,1) pads to 128 lanes
    vmem_limit = min(48 << 20,
                     max(16 << 20, in_bytes + out_bytes + scratch_bytes + (4 << 20)))

    kernel = functools.partial(
        _bce_dice_kernel,
        tile_l=tile_l,
        l_actual=L,
        needs_col_mask=needs_col_mask,
    )

    stats = pl.pallas_call(
        kernel,
        out_shape=jax.ShapeDtypeStruct((grid_rows * tile_r, 128), jnp.float32),
        grid_spec=pltpu.PrefetchScalarGridSpec(
            num_scalar_prefetch=0,
            grid=grid,
            in_specs=[
                pl.BlockSpec((tile_r, tile_l), lambda i, j: (i, j)),
                pl.BlockSpec((tile_r, tile_l), lambda i, j: (i, j)),
            ],
            out_specs=pl.BlockSpec((tile_r, 128), lambda i, j: (i, 0)),
            scratch_shapes=[
                pltpu.VMEM((tile_r, 1), jnp.float32),   # bce row sums
                pltpu.VMEM((tile_r, 1), jnp.float32),   # tp = sum(s*y)
                pltpu.VMEM((tile_r, 1), jnp.float32),   # sum(s) + sum(y)
            ],
        ),
        compiler_params=pltpu.CompilerParams(
            dimension_semantics=("parallel", "arbitrary"),
            vmem_limit_bytes=vmem_limit,
        ),
    )(xp, yt)

    # Tiny final combine in plain JAX (rows beyond R are garbage and dropped).
    bce_rows = stats[:R, 0]
    tp = stats[:R, 1]
    sum_sy = stats[:R, 2]

    bce = jnp.sum(bce_rows) / (R * L)
    # 2*tp + fp + fn == sum(s) + sum(y)
    dc = (2.0 * tp + smooth) / (sum_sy + smooth)
    dice = 1.0 - jnp.mean(dc)
    return bce_ratio * bce + dice_ratio * dice


def _reference(y_pred, y_true, bce_ratio=0.5, dice_ratio=0.5, smooth=1.0):
    x = y_pred.astype(jnp.float32)
    y = y_true.astype(jnp.float32)
    bce = jnp.mean(jnp.maximum(x, 0.0) - x * y + jnp.log1p(jnp.exp(-jnp.abs(x))))
    s = jax.nn.sigmoid(x)
    tp = jnp.sum(s * y, axis=(-2, -1))
    fp = jnp.sum(s * (1.0 - y), axis=(-2, -1))
    fn = jnp.sum((1.0 - s) * y, axis=(-2, -1))
    dc = (2.0 * tp + smooth) / (2.0 * tp + fp + fn + smooth)
    dice = 1.0 - jnp.mean(dc)
    return bce_ratio * bce + dice_ratio * dice


if __name__ == "__main__":
    key = jax.random.PRNGKey(0)
    BCE_RATIO, DICE_RATIO = 0.5, 0.5  # deterministic stand-in for args.*_ratio

    # Case 1: aligned small NCHW shapes (fast path, no ragged tiles).
    k1, k2 = jax.random.split(key)
    N, C, H, W = 2, 4, 16, 16
    y_pred = jax.random.normal(k1, (N, C, H, W), dtype=jnp.float32)            # logits
    y_true = (jax.random.uniform(k2, (N, C, H, W)) > 0.5).astype(jnp.float32)  # mask

    loss = bce_dice_loss(y_pred, y_true, bce_ratio=BCE_RATIO, dice_ratio=DICE_RATIO)
    loss = jax.block_until_ready(loss)
    ref = _reference(y_pred, y_true, BCE_RATIO, DICE_RATIO)
    assert jnp.allclose(loss, ref, rtol=1e-5, atol=1e-5), (loss, ref)

    # Case 2: non-aligned shapes (exercises ragged row/column tiles, no pad).
    k3, k4 = jax.random.split(k1)
    N2, C2, H2, W2 = 2, 3, 10, 10
    y_pred2 = jax.random.normal(k3, (N2, C2, H2, W2), dtype=jnp.float32)
    y_true2 = (jax.random.uniform(k4, (N2, C2, H2, W2)) > 0.5).astype(jnp.float32)

    loss2 = bce_dice_loss(y_pred2, y_true2, bce_ratio=BCE_RATIO, dice_ratio=DICE_RATIO)
    loss2 = jax.block_until_ready(loss2)
    ref2 = _reference(y_pred2, y_true2, BCE_RATIO, DICE_RATIO)
    assert jnp.allclose(loss2, ref2, rtol=1e-5, atol=1e-5), (loss2, ref2)

    # Case 3: bf16 logits + bf16 mask streamed directly (half the HBM bytes);
    # in-register math stays in f32, so it matches the f32 reference of the
    # same bf16-valued inputs.
    k5, k6 = jax.random.split(k3)
    y_pred3 = jax.random.normal(k5, (N, C, H, W), dtype=jnp.float32).astype(jnp.bfloat16)
    y_true3 = (jax.random.uniform(k6, (N, C, H, W)) > 0.5).astype(jnp.bfloat16)

    loss3 = bce_dice_loss(y_pred3, y_true3, bce_ratio=BCE_RATIO, dice_ratio=DICE_RATIO)
    loss3 = jax.block_until_ready(loss3)
    ref3 = _reference(y_pred3, y_true3, BCE_RATIO, DICE_RATIO)
    assert jnp.allclose(loss3, ref3, rtol=1e-4, atol=1e-4), (loss3, ref3)

    print("KERNEL_OK")
</pallas_src>

<mosaic_0001>
module attributes {stable_mosaic.version = 11 : i64} {
  func.func @_bce_dice_kernel(%arg0: i32, %arg1: i32, %arg2: memref<8x256xf32, #tpu.memory_space<vmem>>, %arg3: memref<8x256xf32, #tpu.memory_space<vmem>>, %arg4: memref<8x128xf32, #tpu.memory_space<vmem>>, %arg5: memref<8x1xf32, #tpu.memory_space<vmem>>, %arg6: memref<8x1xf32, #tpu.memory_space<vmem>>, %arg7: memref<8x1xf32, #tpu.memory_space<vmem>>) attributes {dimension_semantics = [#tpu.dimension_semantics<parallel>, #tpu.dimension_semantics<arbitrary>], iteration_bounds = array<i64: 1, 1>, scalar_prefetch = 0 : i64, scratch_operands = 3 : i64, tpu.core_type = #tpu.core_type<tc>, window_params = [{transform_indices = @transform_0, window_bounds = array<i64: 8, 256>}, {transform_indices = @transform_1, window_bounds = array<i64: 8, 256>}, {transform_indices = @transform_2, window_bounds = array<i64: 8, 128>}]} {
    %c0_i32 = arith.constant 0 : i32
    %0 = arith.cmpi eq, %arg1, %c0_i32 : i32
    %1 = arith.extui %0 : i1 to i32
    %c0_i32_0 = arith.constant 0 : i32
    %2 = arith.cmpi ne, %1, %c0_i32_0 : i32
    scf.if %2 {
      %cst_26 = arith.constant 0.000000e+00 : f32
      %44 = vector.broadcast %cst_26 : f32 to vector<8x1xf32>
      %c0_27 = arith.constant 0 : index
      %c0_28 = arith.constant 0 : index
      %45 = vector.load %arg5[%c0_27, %c0_28] : memref<8x1xf32, #tpu.memory_space<vmem>>, vector<8x1xf32>
      tpu.vector_store %arg5[%c0_27, %c0_28], %44 {strides = array<i32>} : memref<8x1xf32, #tpu.memory_space<vmem>>, vector<8x1xf32>,
      %cst_29 = arith.constant 0.000000e+00 : f32
      %46 = vector.broadcast %cst_29 : f32 to vector<8x1xf32>
      %c0_30 = arith.constant 0 : index
      %c0_31 = arith.constant 0 : index
      %47 = vector.load %arg6[%c0_30, %c0_31] : memref<8x1xf32, #tpu.memory_space<vmem>>, vector<8x1xf32>
      tpu.vector_store %arg6[%c0_30, %c0_31], %46 {strides = array<i32>} : memref<8x1xf32, #tpu.memory_space<vmem>>, vector<8x1xf32>,
      %cst_32 = arith.constant 0.000000e+00 : f32
      %48 = vector.broadcast %cst_32 : f32 to vector<8x1xf32>
      %c0_33 = arith.constant 0 : index
      %c0_34 = arith.constant 0 : index
      %49 = vector.load %arg7[%c0_33, %c0_34] : memref<8x1xf32, #tpu.memory_space<vmem>>, vector<8x1xf32>
      tpu.vector_store %arg7[%c0_33, %c0_34], %48 {strides = array<i32>} : memref<8x1xf32, #tpu.memory_space<vmem>>, vector<8x1xf32>,
    } else {
    }
    %c0 = arith.constant 0 : index
    %c0_1 = arith.constant 0 : index
    %3 = vector.load %arg2[%c0, %c0_1] : memref<8x256xf32, #tpu.memory_space<vmem>>, vector<8x256xf32>
    %c0_2 = arith.constant 0 : index
    %c0_3 = arith.constant 0 : index
    %4 = vector.load %arg3[%c0_2, %c0_3] : memref<8x256xf32, #tpu.memory_space<vmem>>, vector<8x256xf32>
    %5 = math.absf %3 : vector<8x256xf32>
    %cst = arith.constant 0.000000e+00 : f32
    %6 = vector.broadcast %cst : f32 to vector<8x256xf32>
    %7 = arith.subf %6, %5 : vector<8x256xf32>
    %8 = math.exp %7 : vector<8x256xf32>
    %cst_4 = arith.constant 0.000000e+00 : f32
    %9 = vector.broadcast %cst_4 : f32 to vector<8x256xf32>
    %10 = arith.maximumf %3, %9 : vector<8x256xf32>
    %11 = arith.mulf %3, %4 : vector<8x256xf32>
    %12 = arith.subf %10, %11 : vector<8x256xf32>
    %13 = math.log1p %8 : vector<8x256xf32>
    %14 = arith.addf %12, %13 : vector<8x256xf32>
    %cst_5 = arith.constant 1.000000e+00 : f32
    %15 = vector.broadcast %cst_5 : f32 to vector<8x256xf32>
    %16 = arith.addf %15, %8 : vector<8x256xf32>
    %cst_6 = arith.constant 1.000000e+00 : f32
    %17 = vector.broadcast %cst_6 : f32 to vector<8x256xf32>
    %18 = arith.divf %17, %16 : vector<8x256xf32>
    %cst_7 = arith.constant 0.000000e+00 : f32
    %19 = vector.broadcast %cst_7 : f32 to vector<8x256xf32>
    %20 = arith.cmpf oge, %3, %19 : vector<8x256xf32>
    %cst_8 = arith.constant 1.000000e+00 : f32
    %21 = vector.broadcast %cst_8 : f32 to vector<8x256xf32>
    %22 = arith.subf %21, %18 : vector<8x256xf32>
    %23 = arith.select %20, %18, %22 : vector<8x256xi1>, vector<8x256xf32>
    %c0_9 = arith.constant 0 : index
    %c0_10 = arith.constant 0 : index
    %24 = vector.load %arg5[%c0_9, %c0_10] : memref<8x1xf32, #tpu.memory_space<vmem>>, vector<8x1xf32>
    %cst_11 = arith.constant dense<0.000000e+00> : vector<8xf32>
    %25 = vector.multi_reduction <add>, %14, %cst_11 [1] : vector<8x256xf32> to vector<8xf32>
    %26 = vector.shape_cast %25 : vector<8xf32> to vector<8x1xf32>
    %27 = arith.addf %24, %26 : vector<8x1xf32>
    %c0_12 = arith.constant 0 : index
    %c0_13 = arith.constant 0 : index
    %28 = vector.load %arg5[%c0_12, %c0_13] : memref<8x1xf32, #tpu.memory_space<vmem>>, vector<8x1xf32>
    tpu.vector_store %arg5[%c0_12, %c0_13], %27 {strides = array<i32>} : memref<8x1xf32, #tpu.memory_space<vmem>>, vector<8x1xf32>,
    %c0_14 = arith.constant 0 : index
    %c0_15 = arith.constant 0 : index
    %29 = vector.load %arg6[%c0_14, %c0_15] : memref<8x1xf32, #tpu.memory_space<vmem>>, vector<8x1xf32>
    %30 = arith.mulf %23, %4 : vector<8x256xf32>
    %cst_16 = arith.constant dense<0.000000e+00> : vector<8xf32>
    %31 = vector.multi_reduction <add>, %30, %cst_16 [1] : vector<8x256xf32> to vector<8xf32>
    %32 = vector.shape_cast %31 : vector<8xf32> to vector<8x1xf32>
    %33 = arith.addf %29, %32 : vector<8x1xf32>
    %c0_17 = arith.constant 0 : index
    %c0_18 = arith.constant 0 : index
    %34 = vector.load %arg6[%c0_17, %c0_18] : memref<8x1xf32, #tpu.memory_space<vmem>>, vector<8x1xf32>
    tpu.vector_store %arg6[%c0_17, %c0_18], %33 {strides = array<i32>} : memref<8x1xf32, #tpu.memory_space<vmem>>, vector<8x1xf32>,
    %c0_19 = arith.constant 0 : index
    %c0_20 = arith.constant 0 : index
    %35 = vector.load %arg7[%c0_19, %c0_20] : memref<8x1xf32, #tpu.memory_space<vmem>>, vector<8x1xf32>
    %36 = arith.addf %23, %4 : vector<8x256xf32>
    %cst_21 = arith.constant dense<0.000000e+00> : vector<8xf32>
    %37 = vector.multi_reduction <add>, %36, %cst_21 [1] : vector<8x256xf32> to vector<8xf32>
    %38 = vector.shape_cast %37 : vector<8xf32> to vector<8x1xf32>
    %39 = arith.addf %35, %38 : vector<8x1xf32>
    %c0_22 = arith.constant 0 : index
    %c0_23 = arith.constant 0 : index
    %40 = vector.load %arg7[%c0_22, %c0_23] : memref<8x1xf32, #tpu.memory_space<vmem>>, vector<8x1xf32>
    tpu.vector_store %arg7[%c0_22, %c0_23], %39 {strides = array<i32>} : memref<8x1xf32, #tpu.memory_space<vmem>>, vector<8x1xf32>,
    %c0_i32_24 = arith.constant 0 : i32
    %41 = arith.cmpi eq, %arg1, %c0_i32_24 : i32
    %42 = arith.extui %41 : i1 to i32
    %c0_i32_25 = arith.constant 0 : i32
    %43 = arith.cmpi ne, %42, %c0_i32_25 : i32
    scf.if %43 {
      %44 = tpu.iota {dimensions = array<i32: 1>} : vector<8x128xi32>
      %c0_i32_26 = arith.constant 0 : i32
      %45 = vector.broadcast %c0_i32_26 : i32 to vector<8x128xi32>
      %46 = arith.cmpi eq, %44, %45 : vector<8x128xi32>
      %c0_27 = arith.constant 0 : index
      %c0_28 = arith.constant 0 : index
      %47 = vector.load %arg5[%c0_27, %c0_28] : memref<8x1xf32, #tpu.memory_space<vmem>>, vector<8x1xf32>
      %c1_i32 = arith.constant 1 : i32
      %48 = vector.broadcast %c1_i32 : i32 to vector<8x128xi32>
      %49 = arith.cmpi eq, %44, %48 : vector<8x128xi32>
      %c0_29 = arith.constant 0 : index
      %c0_30 = arith.constant 0 : index
      %50 = vector.load %arg6[%c0_29, %c0_30] : memref<8x1xf32, #tpu.memory_space<vmem>>, vector<8x1xf32>
      %c2_i32 = arith.constant 2 : i32
      %51 = vector.broadcast %c2_i32 : i32 to vector<8x128xi32>
      %52 = arith.cmpi eq, %44, %51 : vector<8x128xi32>
      %c0_31 = arith.constant 0 : index
      %c0_32 = arith.constant 0 : index
      %53 = vector.load %arg7[%c0_31, %c0_32] : memref<8x1xf32, #tpu.memory_space<vmem>>, vector<8x1xf32>
      %cst_33 = arith.constant 0.000000e+00 : f32
      %54 = vector.shape_cast %53 : vector<8x1xf32> to vector<8x1xf32>
      %55 = vector.broadcast %54 : vector<8x1xf32> to vector<8x128xf32>
      %56 = vector.broadcast %cst_33 : f32 to vector<8x128xf32>
      %57 = arith.select %52, %55, %56 : vector<8x128xi1>, vector<8x128xf32>
      %58 = vector.shape_cast %50 : vector<8x1xf32> to vector<8x1xf32>
      %59 = vector.broadcast %58 : vector<8x1xf32> to vector<8x128xf32>
      %60 = arith.select %49, %59, %57 : vector<8x128xi1>, vector<8x128xf32>
      %61 = vector.shape_cast %47 : vector<8x1xf32> to vector<8x1xf32>
      %62 = vector.broadcast %61 : vector<8x1xf32> to vector<8x128xf32>
      %63 = arith.select %46, %62, %60 : vector<8x128xi1>, vector<8x128xf32>
      %c0_34 = arith.constant 0 : index
      %c0_35 = arith.constant 0 : index
      %64 = vector.load %arg4[%c0_34, %c0_35] : memref<8x128xf32, #tpu.memory_space<vmem>>, vector<8x128xf32>
      tpu.vector_store %arg4[%c0_34, %c0_35], %63 {strides = array<i32>} : memref<8x128xf32, #tpu.memory_space<vmem>>, vector<8x128xf32>,
    } else {
    }
    return
  }
  func.func @transform_0(%arg0: i32, %arg1: i32) -> (i32, i32) {
    %c0_i32 = arith.constant 0 : i32
    return %arg0, %arg1 : i32, i32
  }
  func.func @transform_1(%arg0: i32, %arg1: i32) -> (i32, i32) {
    %c0_i32 = arith.constant 0 : i32
    return %arg0, %arg1 : i32, i32
  }
  func.func @transform_2(%arg0: i32, %arg1: i32) -> (i32, i32) {
    %c0_i32 = arith.constant 0 : i32
    %c0_i32_0 = arith.constant 0 : i32
    return %arg0, %c0_i32 : i32, i32
  }
}

</mosaic_0001>

<llo_original>
// kernel: tpu_custom_call.1
$region0: #{tpu_custom_call.1}
  #allocation0 [shape = 'u32[]', space=smem, size = 0x4, offset = 0x4, fixed_abs, tag = 'smem constant byte address 0x4 - core index']
  #allocation1 [shape = 'u32[72,128]{1,0:T(1,128)}', space=vmem, size = 0x9000, scoped, tag = 'internal scratch']
  #allocation2 [shape = 'f32[8,1]{1,0:T(8,128)}', space=vmem, size = 0x1000, scoped, tag = 'scratch operand']
  #allocation3 [shape = 'f32[8,1]{1,0:T(8,128)}', space=vmem, size = 0x1000, scoped, tag = 'scratch operand']
  #allocation4 [shape = 'f32[8,1]{1,0:T(8,128)}', space=vmem, size = 0x1000, scoped, tag = 'scratch operand']
  %s0 = inlined_call_operand.hbm [shape: f32[8,256], index: 0, kind: input, shape index: {}]
  %s1 = inlined_call_operand.hbm [shape: f32[8,256], index: 1, kind: input, shape index: {}]
  %s2 = inlined_call_operand.hbm [shape: f32[8,128], index: 2, kind: output, shape index: {}]
  %s3 = sld [smem:[#allocation0]]
  $region34: #{tpu_custom_call.1} parent=0
    _
  %s5 = ssub.s32 1, %s3
  %s6 = scalar_select 0, %s5, %s3
  $region1: #{tpu_custom_call.1} parent=0
    #allocation5 [shape = 'u8[8192]{0}', space=vmem, size = 0x2000, scoped, tag = 'input window, operand 0, single buffered']
    #allocation6 [shape = 's32[1]{0}', space=sflag, size = 0x4, scoped, tag = 'scoped memory for tpu_custom_call.1']
    #allocation7 [shape = 's32[1]{0}', space=sflag, size = 0x4, scoped, tag = 'scoped memory for tpu_custom_call.1']
    #allocation8 [shape = 'u8[8192]{0}', space=vmem, size = 0x2000, scoped, tag = 'input window, operand 1, single buffered']
    #allocation9 [shape = 's32[1]{0}', space=sflag, size = 0x4, scoped, tag = 'scoped memory for tpu_custom_call.1']
    #allocation10 [shape = 'u8[4096]{0}', space=vmem, size = 0x1000, scoped, tag = 'output window, operand 0, single buffered']
    %7 = vsyncpa [#allocation6], 0
    %8 = vsyncpa [#allocation9], 0
    %9 = vsyncpa [#allocation7], 0
    // Predicated region
    $region2: #{tpu_custom_call.1} parent=1 // pred_check
      _
    $region3: #{tpu_custom_call.1} parent=1 // pred_check_branch
      %11 = sbr.rel (0) target = $region5
    $region4: #{tpu_custom_call.1} parent=1 // pred_region
      %13 = vsyncadd [#allocation6], 0
      %s15 = sshll.u32 %s0, 4
      %s16 = int_to_ptr.hbm [resolvable:$true] %s15
      %s17 = sshll.u32 [#allocation5], 4
      %s18 = int_to_ptr.vmem [resolvable:$true] %s17
      %20 = dma.hbm_to_vmem [thread:$0]  %s16, 256, %s18, [#allocation6]
    $region5: #{tpu_custom_call.1} parent=1 // pred_fallthru
      _
    // Predicated region
    $region6: #{tpu_custom_call.1} parent=1 // pred_check
      _
    $region7: #{tpu_custom_call.1} parent=1 // pred_check_branch
      %22 = sbr.rel (0) target = $region9
    $region8: #{tpu_custom_call.1} parent=1 // pred_region
      %24 = vsyncadd [#allocation9], 0
      %s26 = sshll.u32 %s1, 4
      %s27 = int_to_ptr.hbm [resolvable:$true] %s26
      %s28 = sshll.u32 [#allocation8], 4
      %s29 = int_to_ptr.vmem [resolvable:$true] %s28
      %31 = dma.hbm_to_vmem [thread:$0]  %s27, 256, %s29, [#allocation9]
    $region9: #{tpu_custom_call.1} parent=1 // pred_fallthru
      _
    // Predicated region
    $region10: #{tpu_custom_call.1} parent=1 // pred_check
      _
    $region11: #{tpu_custom_call.1} parent=1 // pred_check_branch
      %33 = sbr.rel (0) target = $region13
    $region12: #{tpu_custom_call.1} parent=1 // pred_region
      %35 = dma.done [#allocation6], 256
    $region13: #{tpu_custom_call.1} parent=1 // pred_fallthru
      _
    // Predicated region
    $region14: #{tpu_custom_call.1} parent=1 // pred_check
      _
    $region15: #{tpu_custom_call.1} parent=1 // pred_check_branch
      %37 = sbr.rel (0) target = $region17
    $region16: #{tpu_custom_call.1} parent=1 // pred_region
      %39 = dma.done [#allocation9], 256
    $region17: #{tpu_custom_call.1} parent=1 // pred_fallthru
      _
    %p40 = scmp.eq.s32.totalorder 0, 0
    // Predicated region
    $region18: #{tpu_custom_call.1} parent=1 // pred_check
      %p41 = pneg %p40
    $region19: #{tpu_custom_call.1} parent=1 // pred_check_branch
      %43 = sbr.rel (%p41) target = $region21
    $region20: #{tpu_custom_call.1} parent=1 // pred_region
      %vm44 = vcmask 7168
      %45 = vst.msk [vmem:[#allocation2] sm:$0xff] %vm44, 0.0
      %46 = vst.msk [vmem:[#allocation3] sm:$0xff] %vm44, 0.0
      %47 = vst.msk [vmem:[#allocation4] sm:$0xff] %vm44, 0.0
    $region21: #{tpu_custom_call.1} parent=1 // pred_fallthru
      _
    %v48 = vld [vmem:[#allocation5] sm:$0xff]
    %v49 = vld [vmem:[#allocation5 + $0x8] sm:$0xff]
    %v50 = vld [vmem:[#allocation8] sm:$0xff]
    %v51 = vld [vmem:[#allocation8 + $0x8] sm:$0xff]
    %v52 = vand.u32 2147483647, %v48
    %v53 = vand.u32 2147483647, %v49
    %v54 = vsub.f32 0.0, %v52
    %v55 = vsub.f32 0.0, %v53
    %v56 = vmul.f32 %v54, 1.442695
    %v57 = vpow.pop %v56
    %v58 = vmul.f32 %v55, 1.442695
    %v59 = vpow.pop %v58
    %v60 = vmax.f32 %v48, 0.0
    %v61 = vmax.f32 %v49, 0.0
    %v62 = vmul.f32 %v48, %v50
    %v63 = vmul.f32 %v49, %v51
    %v64 = vsub.f32 %v60, %v62
    %v65 = vsub.f32 %v61, %v63
    %v66 = vadd.f32 %v57, 1.0
    %v67 = vlog2.pop %v66
    %v68 = vmul.f32 %v67, 0.6931472
    %v69 = vmul.f32 -0.5, %v57
    %v70 = vadd.f32 %v69, 1.0
    %v71 = vmul.f32 %v70, %v57
    %v72 = vand.u32 2147483647, %v57
    %vm73 = vcmp.lt.f32.partialorder %v72, 0.0004427343
    %v74 = vsel %vm73, %v71, %v68
    %v75 = vadd.f32 %v59, 1.0
    %v76 = vlog2.pop %v75
    %v77 = vmul.f32 %v76, 0.6931472
    %v78 = vmul.f32 -0.5, %v59
    %v79 = vadd.f32 %v78, 1.0
    %v80 = vmul.f32 %v79, %v59
    %v81 = vand.u32 2147483647, %v59
    %vm82 = vcmp.lt.f32.partialorder %v81, 0.0004427343
    %v83 = vsel %vm82, %v80, %v77
    %v84 = vadd.f32 %v64, %v74
    %v85 = vadd.f32 %v65, %v83
    %v86 = vadd.f32 %v57, 1.0
    %v87 = vadd.f32 %v59, 1.0
    %v88 = vrcp.pop %v86
    %v89 = vmul.f32 %v86, %v88
    %v90 = vsub.f32 1.0, %v89
    %v91 = vmul.f32 %v88, %v90
    %v92 = vadd.f32 %v88, %v91
    %vm93 = vweird.f32 %v86
    %vm94 = vweird.f32 %v88
    %vm95 = vmor %vm93, %vm94
    %v96 = vsel %vm95, %v88, %v92
    %v97 = vand.u32 2147483647, %v86
    %vm98 = vcmp.eq.f32.partialorder %v97, 8.507059e+37
    %v99 = vand.u32 %v86, 2147483648
    %v100 = vor.u32 1.1754944e-38, %v99
    %v101 = vsel %vm98, %v100, %v96
    %v102 = vmul.f32 1.0, %v101
    %v103 = vrcp.pop %v87
    %v104 = vmul.f32 %v87, %v103
    %v105 = vsub.f32 1.0, %v104
    %v106 = vmul.f32 %v103, %v105
    %v107 = vadd.f32 %v103, %v106
    %vm108 = vweird.f32 %v87
    %vm109 = vweird.f32 %v103
    %vm110 = vmor %vm108, %vm109
    %v111 = vsel %vm110, %v103, %v107
    %v112 = vand.u32 2147483647, %v87
    %vm113 = vcmp.eq.f32.partialorder %v112, 8.507059e+37
    %v114 = vand.u32 %v87, 2147483648
    %v115 = vor.u32 1.1754944e-38, %v114
    %v116 = vsel %vm113, %v115, %v111
    %v117 = vmul.f32 1.0, %v116
    %vm118 = vcmp.ge.f32.partialorder %v48, 0.0
    %vm119 = vcmp.ge.f32.partialorder %v49, 0.0
    %v120 = vsub.f32 1.0, %v102
    %v121 = vsub.f32 1.0, %v117
    %v122 = vsel %vm118, %v102, %v120
    %v123 = vsel %vm119, %v117, %v121
    %v124 = vld [vmem:[#allocation2] sm:$0xff]
    %v125 = vadd.f32 %v84, %v85
    %126 = vadd.xlane.f32.xlu0 %v125
    %v127 = vpop.xlane.xlu0 %126
    %v128 = vadd.f32 %v124, %v127
    %vm129 = vcmask 7168
    %130 = vst.msk [vmem:[#allocation2] sm:$0xff] %vm129, %v128
    %v131 = vld [vmem:[#allocation3] sm:$0xff]
    %v132 = vmul.f32 %v122, %v50
    %v133 = vmul.f32 %v123, %v51
    %v134 = vadd.f32 %v132, %v133
    %135 = vadd.xlane.f32.xlu0 %v134
    %v136 = vpop.xlane.xlu0 %135
    %v137 = vadd.f32 %v131, %v136
    %138 = vst.msk [vmem:[#allocation3] sm:$0xff] %vm129, %v137
    %v139 = vld [vmem:[#allocation4] sm:$0xff]
    %v140 = vadd.f32 %v122, %v50
    %v141 = vadd.f32 %v123, %v51
    %v142 = vadd.f32 %v140, %v141
    %143 = vadd.xlane.f32.xlu0 %v142
    %v144 = vpop.xlane.xlu0 %143
    %v145 = vadd.f32 %v139, %v144
    %146 = vst.msk [vmem:[#allocation4] sm:$0xff] %vm129, %v145
    // Predicated region
    $region22: #{tpu_custom_call.1} parent=1 // pred_check
      %p147 = pneg %p40
    $region23: #{tpu_custom_call.1} parent=1 // pred_check_branch
      %149 = sbr.rel (%p147) target = $region25
    $region24: #{tpu_custom_call.1} parent=1 // pred_region
      %v150 = vlaneseq
      %v151 = vand.u32 %v150, 127
      %vm152 = vcmp.eq.s32.totalorder %v151, 0
      %v153 = vld [vmem:[#allocation2] sm:$0xff]
      %vm154 = vcmp.eq.s32.totalorder %v151, 1
      %v155 = vld [vmem:[#allocation3] sm:$0xff]
      %vm156 = vcmp.eq.s32.totalorder %v151, 2
      %v157 = vld [vmem:[#allocation4] sm:$0xff]
      %159 = vset.pattern.permute.xlu0 0
      %160 = vperm.xlu0 %159, %v157
      %v161 = vpop.permute.xlu0 %160
      %v163 = vsel %vm156, %v161, 0.0
      %165 = vset.pattern.permute.xlu0 0
      %166 = vperm.xlu0 %165, %v155
      %v167 = vpop.permute.xlu0 %166
      %v169 = vsel %vm154, %v167, %v163
      %171 = vset.pattern.permute.xlu0 0
      %172 = vperm.xlu0 %171, %v153
      %v173 = vpop.permute.xlu0 %172
      %v175 = vsel %vm152, %v173, %v169
      %176 = vst [vmem:[#allocation10] sm:$0xff] %v175
    $region25: #{tpu_custom_call.1} parent=1 // pred_fallthru
      _
    // Predicated region
    $region26: #{tpu_custom_call.1} parent=1 // pred_check
      _
    $region27: #{tpu_custom_call.1} parent=1 // pred_check_branch
      %178 = sbr.rel (0) target = $region29
    $region28: #{tpu_custom_call.1} parent=1 // pred_region
      %180 = vsyncadd [#allocation7], 0
      %s182 = sshll.u32 [#allocation10], 4
      %s183 = int_to_ptr.vmem [resolvable:$true] %s182
      %s184 = sshll.u32 %s2, 4
      %s185 = int_to_ptr.hbm [resolvable:$true] %s184
      %187 = dma.vmem_to_hbm [thread:$0]  %s183, 128, %s185, [#allocation7]
    $region29: #{tpu_custom_call.1} parent=1 // pred_fallthru
      _
    // Predicated region
    $region30: #{tpu_custom_call.1} parent=1 // pred_check
      _
    $region31: #{tpu_custom_call.1} parent=1 // pred_check_branch
      %189 = sbr.rel (0) target = $region33
    $region32: #{tpu_custom_call.1} parent=1 // pred_region
      %191 = dma.done [#allocation7], 128
    $region33: #{tpu_custom_call.1} parent=1 // pred_fallthru
      _
    %192 = vsyncpa [#allocation6], 1
    %193 = vsyncpa [#allocation9], 1
    %194 = vsyncpa [#allocation7], 1

</llo_original>
